<compile_context>
chip_gen: v5e
topology: v5e:2x2
jax: 0.10.0
libtpu: 0.0.40
codegen_flags: <defaults>
</compile_context>

<pallas_src>
import functools

import jax
import jax.numpy as jnp
from jax.experimental import pallas as pl
from jax.experimental.pallas import tpu as pltpu

LANES = 1024            # lane-dense last dim (multiple of 128)
_ROW_TILE = 8 * LANES   # minimal padding granularity: one (8, 1024) tile


# ---------------------------------------------------------------------------
# Generation-dependent sizing (v5e / v6e / v7x).
# ---------------------------------------------------------------------------
@functools.lru_cache(maxsize=1)
def _tpu_config():
    kind = ""
    try:
        kind = jax.devices()[0].device_kind.lower()
    except Exception:  # pragma: no cover - CPU fallback / interpret mode
        pass
    if "v7" in kind:
        # 64 MiB VMEM per TC; grid-less fused call runs on a single TC.
        return dict(fused_max_bytes=8 << 20, fused_vmem=48 << 20,
                    block_rows=1024, tiled_vmem=48 << 20)
    if "v6" in kind:
        return dict(fused_max_bytes=16 << 20, fused_vmem=96 << 20,
                    block_rows=1024, tiled_vmem=48 << 20)
    if "v5" in kind:
        return dict(fused_max_bytes=16 << 20, fused_vmem=96 << 20,
                    block_rows=512, tiled_vmem=32 << 20)
    # Unknown generation: conservative defaults.
    return dict(fused_max_bytes=8 << 20, fused_vmem=48 << 20,
                block_rows=512, tiled_vmem=32 << 20)


# ---------------------------------------------------------------------------
# Fused path: whole (padded) slab resident in VMEM; one kernel does everything.
# ---------------------------------------------------------------------------
def _dorefa_fused_kernel(x_ref, o_ref, *, nbit_w):
    xb = x_ref[...].astype(jnp.float32)
    # max(|tanh(x)|) == tanh(max(|x|)): reduce |x| (no transcendental work in
    # the reduction), apply tanh once to the (1,1) scalar.
    m = jnp.tanh(jnp.max(jnp.abs(xb), axis=(0, 1), keepdims=True))   # (1, 1)
    t = jnp.tanh(xb)
    if nbit_w == 32:
        w = t * (1.0 / m)                      # == 2*(t/(2m)+0.5) - 1
    else:
        scale = float(2 ** nbit_w - 1)
        a = scale / (2.0 * m)                  # (1,1), computed once per call
        # folded: round((t/(2m)+0.5)*scale) * (2/scale) - 1
        w = jnp.round(t * a + 0.5 * scale) * (2.0 / scale) - 1.0
    o_ref[...] = w.astype(o_ref.dtype)


# ---------------------------------------------------------------------------
# Tiled path, pass 1: per-block partial max|x| on a "parallel" grid.
# Masks the out-of-bounds rows of a ragged last block (garbage must not win
# the max); `rows`/`block_rows` are static Python ints baked via partial.
# ---------------------------------------------------------------------------
def _absmax_partial_kernel(x_ref, part_ref, *, rows, block_rows):
    xa = jnp.abs(x_ref[...].astype(jnp.float32))
    if rows % block_rows != 0:
        base = pl.program_id(0) * block_rows
        row_ids = base + jax.lax.broadcasted_iota(jnp.int32, xa.shape, 0)
        xa = jnp.where(row_ids < rows, xa, 0.0)
    blk_max = jnp.max(xa, axis=(0, 1), keepdims=True)                # (1, 1)
    part_ref[...] = jnp.broadcast_to(blk_max, part_ref.shape)


# ---------------------------------------------------------------------------
# Tiled path, pass 2: elementwise quantization.  The single runtime scalar
# `a` (folded coefficient) arrives via SMEM; nbit_w is a static Python int.
# Ragged last block is safe: OOB input rows are garbage but their outputs are
# discarded by Pallas on writeback.
# ---------------------------------------------------------------------------
def _dorefa_quant_kernel(coeff_ref, x_ref, o_ref, *, nbit_w):
    t = jnp.tanh(x_ref[...].astype(jnp.float32))
    a = coeff_ref[0, 0]
    if nbit_w == 32:
        w = t * a                                  # a = 1 / tanh(max|x|)
    else:
        scale = float(2 ** nbit_w - 1)
        # a = scale / (2 * tanh(max|x|));  b = scale/2, c = 2/scale are static.
        w = jnp.round(t * a + 0.5 * scale) * (2.0 / scale) - 1.0
    o_ref[...] = w.astype(o_ref.dtype)


# ---------------------------------------------------------------------------
# Wrapper (jit-compiled: nbit_w / layout knobs are static).
# ---------------------------------------------------------------------------
@functools.partial(jax.jit, static_argnames=("nbit_w", "force_tiled", "block_rows"))
def dorefa_w(x, nbit_w, force_tiled=False, block_rows=None):
    """DoReFaW.forward(x, nbit_w).  `nbit_w` must be a static Python int."""
    cfg = _tpu_config()
    orig_shape = x.shape
    orig_dtype = x.dtype

    flat = x.reshape(-1)
    n = flat.shape[0]

    # Pad only to one (8, 1024) row tile; skip entirely when already aligned.
    # Padding zeros are harmless for the reduction (|0| never wins the max).
    n_pad = pl.cdiv(n, _ROW_TILE) * _ROW_TILE
    if n_pad != n:
        flat = jnp.pad(flat, (0, n_pad - n))
    x2d = flat.reshape(-1, LANES)                  # (rows, 1024), rows % 8 == 0
    rows = x2d.shape[0]

    use_fused = (not force_tiled) and (n_pad * 4 <= cfg["fused_max_bytes"])

    if use_fused:
        # Whole slab in VMEM, single kernel (canonical no-grid pallas_call).
        out2d = pl.pallas_call(
            functools.partial(_dorefa_fused_kernel, nbit_w=nbit_w),
            out_shape=jax.ShapeDtypeStruct(x2d.shape, orig_dtype),
            compiler_params=pltpu.CompilerParams(
                vmem_limit_bytes=cfg["fused_vmem"]),
        )(x2d)
    else:
        br = block_rows if block_rows is not None else cfg["block_rows"]
        br = min(br, rows)              # rows % 8 == 0, so br stays 8-aligned
        nblk = pl.cdiv(rows, br)        # ragged last block is allowed

        # Pass 1: per-block partial max|x| (parallel, streaming, no tanh).
        partials = pl.pallas_call(
            functools.partial(_absmax_partial_kernel, rows=rows, block_rows=br),
            out_shape=jax.ShapeDtypeStruct((nblk * 8, 128), jnp.float32),
            grid=(nblk,),
            in_specs=[pl.BlockSpec((br, LANES), lambda i: (i, 0))],
            out_specs=pl.BlockSpec((8, 128), lambda i: (i, 0)),
            compiler_params=pltpu.CompilerParams(
                dimension_semantics=("parallel",),
                vmem_limit_bytes=cfg["tiled_vmem"]),
        )(x2d)

        # Tiny scalar epilogue: final max, tanh once, fold divides into one
        # multiply coefficient.  (maxv == 0 -> inf/NaN, same as the reference.)
        m = jnp.tanh(jnp.max(partials))
        if nbit_w == 32:
            coeff = 1.0 / m
        else:
            coeff = float(2 ** nbit_w - 1) / (2.0 * m)
        coeff = coeff.astype(jnp.float32).reshape(1, 1)

        # Pass 2: elementwise quantization with lane-dense blocks.
        out2d = pl.pallas_call(
            functools.partial(_dorefa_quant_kernel, nbit_w=nbit_w),
            out_shape=jax.ShapeDtypeStruct(x2d.shape, orig_dtype),
            grid=(nblk,),
            in_specs=[
                pl.BlockSpec(memory_space=pltpu.MemorySpace.SMEM),   # coeff
                pl.BlockSpec((br, LANES), lambda i: (i, 0)),         # x tile
            ],
            out_specs=pl.BlockSpec((br, LANES), lambda i: (i, 0)),
            compiler_params=pltpu.CompilerParams(
                dimension_semantics=("parallel",),
                vmem_limit_bytes=cfg["tiled_vmem"]),
        )(coeff, x2d)

    out_flat = out2d.reshape(-1)
    if n_pad != n:
        out_flat = out_flat[:n]
    return out_flat.reshape(orig_shape)


# ---------------------------------------------------------------------------
# Pure-JAX reference (mirrors the PyTorch module's forward exactly).
# TODO(synk): the straight-through-estimator backward (DynmQuantizer.backward)
# is an autograd rule, not a forward op, and is not implemented here.
# ---------------------------------------------------------------------------
def _dorefa_w_ref(x, nbit_w):
    w = jnp.tanh(x.astype(jnp.float32))
    maxv = jnp.max(jnp.abs(w))
    w = w / (2.0 * maxv) + 0.5
    if nbit_w != 32:
        scale = float(2 ** nbit_w - 1)
        w = jnp.round(w * scale) / scale
    return (2.0 * w - 1.0).astype(x.dtype)


def _assert_close(out, ref, nbit_w):
    out = jnp.asarray(out, jnp.float32)
    ref = jnp.asarray(ref, jnp.float32)
    diff = jnp.abs(out - ref)
    if nbit_w == 32:
        assert float(jnp.max(diff)) < 1e-5, float(jnp.max(diff))
        return
    # Values sitting exactly on a rounding boundary may flip by one quant step
    # due to ULP-level tanh/divide differences between Mosaic and XLA; such
    # flips must be rare and everything else must match tightly.
    step = 2.0 / float(2 ** nbit_w - 1)
    mismatch = diff > 1e-5
    assert bool(jnp.all(jnp.where(mismatch, jnp.abs(diff - step) < 1e-4, True)))
    assert float(jnp.mean(mismatch.astype(jnp.float32))) <= 0.01


if __name__ == "__main__":
    key = jax.random.PRNGKey(0)
    k1, k2, k3 = jax.random.split(key, 3)

    # Conv-weight-like OIHW tensors, consistent with DoReFa-Net usage.
    x_a = jax.random.normal(k1, (2, 4, 16, 16), dtype=jnp.float32)
    x_b = jax.random.normal(k2, (8, 4, 3, 3), dtype=jnp.float32)     # ragged size
    x_c = jax.random.normal(k3, (40, 4, 16, 16), dtype=jnp.float32)  # 40 row tiles

    for nbit in (2, 4, 32):
        for x in (x_a, x_b):
            out = jax.block_until_ready(dorefa_w(x, nbit_w=nbit))
            ref = _dorefa_w_ref(x, nbit)
            assert out.shape == x.shape and out.dtype == x.dtype
            _assert_close(out, ref, nbit)

    # Exercise the tiled two-pass path, including a ragged last block
    # (40 rows with 16-row blocks -> 3 blocks, last one half-masked).
    for nbit in (2, 32):
        out_t = jax.block_until_ready(
            dorefa_w(x_c, nbit_w=nbit, force_tiled=True, block_rows=16))
        _assert_close(out_t, _dorefa_w_ref(x_c, nbit), nbit)
        out_t2 = jax.block_until_ready(
            dorefa_w(x_a, nbit_w=nbit, force_tiled=True))
        _assert_close(out_t2, _dorefa_w_ref(x_a, nbit), nbit)

    print("KERNEL_OK")
</pallas_src>

<mosaic_0001>
module attributes {stable_mosaic.version = 11 : i64} {
  func.func @_dorefa_fused_kernel(%arg0: memref<8x1024xf32, #tpu.memory_space<vmem>>, %arg1: memref<8x1024xf32, #tpu.memory_space<vmem>>) attributes {dimension_semantics = [], scalar_prefetch = 0 : i64, scratch_operands = 0 : i64, tpu.core_type = #tpu.core_type<tc>} {
    %c0 = arith.constant 0 : index
    %c0_0 = arith.constant 0 : index
    %0 = vector.load %arg0[%c0, %c0_0] : memref<8x1024xf32, #tpu.memory_space<vmem>>, vector<8x1024xf32>
    %1 = math.absf %0 : vector<8x1024xf32>
    %2 = vector.shape_cast %1 : vector<8x1024xf32> to vector<1x8x1024xf32>
    %cst = arith.constant dense<0xFF800000> : vector<1xf32>
    %3 = vector.multi_reduction <maximumf>, %2, %cst [1, 2] : vector<1x8x1024xf32> to vector<1xf32>
    %4 = vector.shape_cast %3 : vector<1xf32> to vector<1x1x1xf32>
    %5 = vector.extract %4[0, 0, 0] : f32 from vector<1x1x1xf32>
    %6 = vector.broadcast %5 : f32 to vector<1x1xf32>
    %7 = math.tanh %6 : vector<1x1xf32>
    %8 = math.tanh %0 : vector<8x1024xf32>
    %cst_1 = arith.constant 2.000000e+00 : f32
    %9 = vector.broadcast %cst_1 : f32 to vector<1x1xf32>
    %10 = arith.mulf %9, %7 : vector<1x1xf32>
    %cst_2 = arith.constant 3.000000e+00 : f32
    %11 = vector.broadcast %cst_2 : f32 to vector<1x1xf32>
    %12 = arith.divf %11, %10 : vector<1x1xf32>
    %13 = vector.broadcast %12 : vector<1x1xf32> to vector<8x1024xf32>
    %14 = arith.mulf %8, %13 : vector<8x1024xf32>
    %cst_3 = arith.constant 1.500000e+00 : f32
    %15 = vector.broadcast %cst_3 : f32 to vector<8x1024xf32>
    %16 = arith.addf %14, %15 : vector<8x1024xf32>
    %17 = math.roundeven %16 : vector<8x1024xf32>
    %cst_4 = arith.constant 0.666666686 : f32
    %18 = vector.broadcast %cst_4 : f32 to vector<8x1024xf32>
    %19 = arith.mulf %17, %18 : vector<8x1024xf32>
    %cst_5 = arith.constant 1.000000e+00 : f32
    %20 = vector.broadcast %cst_5 : f32 to vector<8x1024xf32>
    %21 = arith.subf %19, %20 : vector<8x1024xf32>
    %c0_6 = arith.constant 0 : index
    %c0_7 = arith.constant 0 : index
    %22 = vector.load %arg1[%c0_6, %c0_7] : memref<8x1024xf32, #tpu.memory_space<vmem>>, vector<8x1024xf32>
    tpu.vector_store %arg1[%c0_6, %c0_7], %21 {strides = array<i32>} : memref<8x1024xf32, #tpu.memory_space<vmem>>, vector<8x1024xf32>,
    return
  }
}

</mosaic_0001>

<llo_original>
// kernel: dorefa_w.1
$region0: #{dorefa_w.1}
  #allocation0 [shape = 'u32[]', space=smem, size = 0x4, offset = 0x4, fixed_abs, tag = 'smem constant byte address 0x4 - core index']
  #allocation1 [shape = 'u32[72,128]{1,0:T(1,128)}', space=vmem, size = 0x9000, scoped, tag = 'internal scratch']
  %s0 = inlined_call_operand.vmem [shape: f32[8,1024], index: 0, kind: input, shape index: {}]
  %s1 = inlined_call_operand.vmem [shape: f32[8,1024], index: 1, kind: output, shape index: {}]
  %s2 = sld [smem:[#allocation0]]
  $region14: #{dorefa_w.1} parent=0
    _
  %s4 = ssub.s32 1, %s2
  %s5 = scalar_select 0, %s4, %s2
  // Predicated region
  $region2: #{dorefa_w.1} parent=0 // pred_check
    _
  $region3: #{dorefa_w.1} parent=0 // pred_check_branch
    %7 = sbr.rel (0) target = $region5
  $region4: #{dorefa_w.1} parent=0 // pred_region
    _
  $region5: #{dorefa_w.1} parent=0 // pred_fallthru
    _
  %v8 = vld [vmem:[%s0] sm:$0xff]
  %v9 = vld [vmem:[%s0 + $0x8] sm:$0xff]
  %v10 = vld [vmem:[%s0 + $0x10] sm:$0xff]
  %v11 = vld [vmem:[%s0 + $0x18] sm:$0xff]
  %v12 = vld [vmem:[%s0 + $0x20] sm:$0xff]
  %v13 = vld [vmem:[%s0 + $0x28] sm:$0xff]
  %v14 = vld [vmem:[%s0 + $0x30] sm:$0xff]
  %v15 = vld [vmem:[%s0 + $0x38] sm:$0xff]
  %v16 = vand.u32 2147483647, %v8
  %v17 = vand.u32 2147483647, %v9
  %v18 = vand.u32 2147483647, %v10
  %v19 = vand.u32 2147483647, %v11
  %v20 = vand.u32 2147483647, %v12
  %v21 = vand.u32 2147483647, %v13
  %v22 = vand.u32 2147483647, %v14
  %v23 = vand.u32 2147483647, %v15
  %v24 = vmax.f32 %v16, %v20
  %v25 = vmax.f32 %v17, %v21
  %v26 = vmax.f32 %v18, %v22
  %v27 = vmax.f32 %v19, %v23
  %v28 = vmax.f32 %v24, %v25
  %v29 = vmax.f32 %v26, %v27
  %v30 = vmax.f32 %v28, %v29
  %31 = vmax.xlane.f32.xlu0 %v30
  %v32 = vpop.xlane.xlu0 %31
  %v33 = vrot.slane %v32, 4
  %v34 = vmax.f32 %v32, %v33
  %v35 = vrot.slane %v34, 2
  %v36 = vmax.f32 %v34, %v35
  %v37 = vrot.slane %v36, 1
  %v38 = vmax.f32 %v36, %v37
  %s39 = vtos %v38
  %v40 = vstv %s39
  %v41 = vtanh.pop %v40
  %v42 = vtanh.pop %v8
  %v43 = vtanh.pop %v9
  %v44 = vtanh.pop %v10
  %v45 = vtanh.pop %v11
  %v46 = vtanh.pop %v12
  %v47 = vtanh.pop %v13
  %v48 = vtanh.pop %v14
  %v49 = vtanh.pop %v15
  %v50 = vmul.f32 %v41, 2.0
  %v51 = vrcp.pop %v50
  %v52 = vmul.f32 %v50, %v51
  %v53 = vsub.f32 1.0, %v52
  %v54 = vmul.f32 %v51, %v53
  %v55 = vadd.f32 %v51, %v54
  %vm56 = vweird.f32 %v50
  %vm57 = vweird.f32 %v51
  %vm58 = vmor %vm56, %vm57
  %v59 = vsel %vm58, %v51, %v55
  %v60 = vand.u32 2147483647, %v50
  %vm61 = vcmp.eq.f32.partialorder %v60, 8.507059e+37
  %v62 = vand.u32 %v50, 2147483648
  %v63 = vor.u32 1.1754944e-38, %v62
  %v64 = vsel %vm61, %v63, %v59
  %v65 = vmul.f32 3.0, %v64
  %v66 = vmul.f32 %v42, %v65
  %v67 = vmul.f32 %v43, %v65
  %v68 = vmul.f32 %v44, %v65
  %v69 = vmul.f32 %v45, %v65
  %v70 = vmul.f32 %v46, %v65
  %v71 = vmul.f32 %v47, %v65
  %v72 = vmul.f32 %v48, %v65
  %v73 = vmul.f32 %v49, %v65
  %v74 = vadd.f32 %v66, 1.5
  %v75 = vadd.f32 %v67, 1.5
  %v76 = vadd.f32 %v68, 1.5
  %v77 = vadd.f32 %v69, 1.5
  %v78 = vadd.f32 %v70, 1.5
  %v79 = vadd.f32 %v71, 1.5
  %v80 = vadd.f32 %v72, 1.5
  %v81 = vadd.f32 %v73, 1.5
  %v82 = vround.ne.pseudo %v74
  %v83 = vround.ne.pseudo %v75
  %v84 = vround.ne.pseudo %v76
  %v85 = vround.ne.pseudo %v77
  %v86 = vround.ne.pseudo %v78
  %v87 = vround.ne.pseudo %v79
  %v88 = vround.ne.pseudo %v80
  %v89 = vround.ne.pseudo %v81
  %v90 = vmul.f32 %v82, 0.6666667
  %v91 = vmul.f32 %v83, 0.6666667
  %v92 = vmul.f32 %v84, 0.6666667
  %v93 = vmul.f32 %v85, 0.6666667
  %v94 = vmul.f32 %v86, 0.6666667
  %v95 = vmul.f32 %v87, 0.6666667
  %v96 = vmul.f32 %v88, 0.6666667
  %v97 = vmul.f32 %v89, 0.6666667
  %v98 = vsub.f32 %v90, 1.0
  %v99 = vsub.f32 %v91, 1.0
  %v100 = vsub.f32 %v92, 1.0
  %v101 = vsub.f32 %v93, 1.0
  %v102 = vsub.f32 %v94, 1.0
  %v103 = vsub.f32 %v95, 1.0
  %v104 = vsub.f32 %v96, 1.0
  %v105 = vsub.f32 %v97, 1.0
  %106 = vst [vmem:[%s1] sm:$0xff] %v98
  %107 = vst [vmem:[%s1 + $0x8] sm:$0xff] %v99
  %108 = vst [vmem:[%s1 + $0x10] sm:$0xff] %v100
  %109 = vst [vmem:[%s1 + $0x18] sm:$0xff] %v101
  %110 = vst [vmem:[%s1 + $0x20] sm:$0xff] %v102
  %111 = vst [vmem:[%s1 + $0x28] sm:$0xff] %v103
  %112 = vst [vmem:[%s1 + $0x30] sm:$0xff] %v104
  %113 = vst [vmem:[%s1 + $0x38] sm:$0xff] %v105
  // Predicated region
  $region6: #{dorefa_w.1} parent=0 // pred_check
    _
  $region7: #{dorefa_w.1} parent=0 // pred_check_branch
    %115 = sbr.rel (0) target = $region9
  $region8: #{dorefa_w.1} parent=0 // pred_region
    _
  $region9: #{dorefa_w.1} parent=0 // pred_fallthru
    _
  // Predicated region
  $region10: #{dorefa_w.1} parent=0 // pred_check
    _
  $region11: #{dorefa_w.1} parent=0 // pred_check_branch
    %117 = sbr.rel (0) target = $region13
  $region12: #{dorefa_w.1} parent=0 // pred_region
    _
  $region13: #{dorefa_w.1} parent=0 // pred_fallthru
    _

</llo_original>
